<compile_context>
chip_gen: v7x
topology: tpu7x:2x2x1
jax: 0.10.0
libtpu: 0.0.40
codegen_flags: <defaults>
</compile_context>

<pallas_src>
import functools

import jax
import jax.numpy as jnp
from jax import lax
from jax.experimental import pallas as pl
from jax.experimental.pallas import tpu as pltpu

# Hyperparameters implied by the module
BLOCK_SIZE = 8      # block_size
N_EMBD = 32         # n_embd
VOCAB_SIZE = 65     # synthetic vocab (len(chars)); deterministic choice
LANE = 128          # TPU lane width


# ---------------------------------------------------------------------------
# Kernels
# ---------------------------------------------------------------------------
def _compute_logits(idx_ref, emb_ref, w_ref, b_ref, *, T, Vp):
    """Shared body: combined one-hot gather (token + position) then one matmul."""
    BT = idx_ref.shape[0]
    K = emb_ref.shape[0]                                   # Vp + Pp (= 256)
    lane = lax.broadcasted_iota(jnp.int32, (BT, K), 1)
    row = lax.broadcasted_iota(jnp.int32, (BT, K), 0)
    # Combined one-hot: token id selects a lane in [0, Vp); the row's position
    # (row % T, b-major flattening) selects a lane at offset Vp.  Exactly two
    # ones per row, so a single MXU push yields tok_emb + pos_emb exactly
    # (0/1 * bf16 products are exact; f32 accumulation).
    onehot = jnp.logical_or(lane == idx_ref[...],
                            lane == (Vp + (row % T))).astype(jnp.bfloat16)
    emb = jnp.dot(onehot, emb_ref[...],
                  preferred_element_type=jnp.float32)                  # (BT, C)
    logits = jnp.dot(emb.astype(jnp.bfloat16), w_ref[...],
                     preferred_element_type=jnp.float32) + b_ref[...]  # (BT, Vp)
    return logits


def _bigram_kernel(idx_ref, emb_ref, w_ref, b_ref, out_ref, *, T, Vp):
    # idx_ref: (BT,1) i32 | emb_ref: (Vp+128, C) bf16 | w_ref: (C, Vp) bf16
    # b_ref: (1, Vp) f32  | out_ref: (BT, Vp) f32
    out_ref[...] = _compute_logits(idx_ref, emb_ref, w_ref, b_ref, T=T, Vp=Vp)


def _bigram_loss_kernel(idx_ref, tgt_ref, emb_ref, w_ref, b_ref,
                        out_ref, loss_ref, *, T, V, Vp):
    logits = _compute_logits(idx_ref, emb_ref, w_ref, b_ref, T=T, Vp=Vp)
    out_ref[...] = logits
    BT = logits.shape[0]
    lane = lax.broadcasted_iota(jnp.int32, (BT, Vp), 1)
    # Mask pad lanes (v >= V) to -inf before logsumexp so the zero-padded
    # columns do not contaminate the softmax denominator.
    masked = jnp.where(lane < V, logits, jnp.float32(-1e30))
    m = jnp.max(masked, axis=-1, keepdims=True)
    lse = m + jnp.log(jnp.sum(jnp.exp(masked - m), axis=-1, keepdims=True))
    picked = jnp.sum(jnp.where(lane == tgt_ref[...], logits, 0.0),
                     axis=-1, keepdims=True)
    loss_ref[...] = lse - picked                                        # (BT, 1)


# ---------------------------------------------------------------------------
# Wrappers
# ---------------------------------------------------------------------------
def prepare_params(tok_table, pos_table, lm_w, lm_b):
    """One-time parameter prep (re-run only after a weight update):
    pad vocab axis to a full lane width, concat token+position tables,
    cast MXU operands to bf16.  Keeps per-call wrapper XLA ops off the hot path."""
    V, C = tok_table.shape
    P = pos_table.shape[0]
    Vp = pl.cdiv(V, LANE) * LANE
    Pp = LANE                                    # positions padded to a lane block
    tok_pad = jnp.pad(tok_table, ((0, Vp - V), (0, 0)))
    pos_pad = jnp.pad(pos_table, ((0, Pp - P), (0, 0)))
    emb = jnp.concatenate([tok_pad, pos_pad], axis=0).astype(jnp.bfloat16)  # (Vp+Pp, C)
    w_pad = jnp.pad(lm_w, ((0, 0), (0, Vp - V))).astype(jnp.bfloat16)       # (C, Vp)
    b_pad = jnp.pad(lm_b.reshape(1, V), ((0, 0), (0, Vp - V))).astype(jnp.float32)
    return {"emb": emb, "w": w_pad, "b": b_pad,
            "V": V, "Vp": Vp, "block_size": P}


def bigram_forward(idx, params, targets=None):
    """Pallas forward pass. Returns (logits, loss), matching the torch module."""
    B, T = idx.shape
    V, Vp = params["V"], params["Vp"]
    assert T <= params["block_size"], "sequence length exceeds block_size"
    BT = B * T
    idx_flat = idx.reshape(BT, 1).astype(jnp.int32)
    vmem = pl.BlockSpec(memory_space=pltpu.MemorySpace.VMEM)

    if targets is None:
        logits_pad = pl.pallas_call(
            functools.partial(_bigram_kernel, T=T, Vp=Vp),
            out_shape=jax.ShapeDtypeStruct((BT, Vp), jnp.float32),
            in_specs=[vmem] * 4,
            out_specs=vmem,
        )(idx_flat, params["emb"], params["w"], params["b"])
        return logits_pad[:, :V].reshape(B, T, V), None

    tgt_flat = targets.reshape(BT, 1).astype(jnp.int32)
    logits_pad, loss_rows = pl.pallas_call(
        functools.partial(_bigram_loss_kernel, T=T, V=V, Vp=Vp),
        out_shape=(jax.ShapeDtypeStruct((BT, Vp), jnp.float32),
                   jax.ShapeDtypeStruct((BT, 1), jnp.float32)),
        in_specs=[vmem] * 5,
        out_specs=(vmem, vmem),
    )(idx_flat, tgt_flat, params["emb"], params["w"], params["b"])
    logits = logits_pad[:, :V]          # torch returns the (B*T, V) view here
    loss = jnp.mean(loss_rows)
    return logits, loss


def init_params(key):
    k1, k2, k3, k4 = jax.random.split(key, 4)
    tok_table = jax.random.normal(k1, (VOCAB_SIZE, N_EMBD), jnp.float32) * 0.02
    pos_table = jax.random.normal(k2, (BLOCK_SIZE, N_EMBD), jnp.float32) * 0.02
    # torch Linear stores weight as (V, C); we store the transpose (C, V).
    lm_w = jax.random.normal(k3, (N_EMBD, VOCAB_SIZE), jnp.float32) * 0.02
    lm_b = jax.random.normal(k4, (1, VOCAB_SIZE), jnp.float32) * 0.02
    return tok_table, pos_table, lm_w, lm_b


if __name__ == "__main__":
    key = jax.random.PRNGKey(0)
    pkey, ikey, tkey = jax.random.split(key, 3)
    tok_table, pos_table, lm_w, lm_b = init_params(pkey)
    params = prepare_params(tok_table, pos_table, lm_w, lm_b)

    B, T = 2, BLOCK_SIZE
    idx = jax.random.randint(ikey, (B, T), 0, VOCAB_SIZE, dtype=jnp.int32)

    # targets=None path (matches the torch module's inference path).
    logits, loss = bigram_forward(idx, params, targets=None)
    logits = jax.block_until_ready(logits)

    # Pure-JAX f32 reference (kernel uses bf16 MXU inputs, f32 accumulation).
    ref = (tok_table[idx] + pos_table[jnp.arange(T)][None]) @ lm_w + lm_b[0]
    assert logits.shape == (B, T, VOCAB_SIZE)
    assert jnp.allclose(logits, ref, atol=1e-3), "logits mismatch vs reference"
    assert loss is None

    # Training path with in-kernel fused cross-entropy.
    targets = jax.random.randint(tkey, (B, T), 0, VOCAB_SIZE, dtype=jnp.int32)
    flat_logits, loss2 = bigram_forward(idx, params, targets)
    loss2 = jax.block_until_ready(loss2)
    assert flat_logits.shape == (B * T, VOCAB_SIZE)

    flat_ref = ref.reshape(B * T, VOCAB_SIZE)
    logz = jax.nn.logsumexp(flat_ref, axis=-1)
    picked = jnp.take_along_axis(flat_ref, targets.reshape(-1, 1), axis=-1)[:, 0]
    loss_ref_val = jnp.mean(logz - picked)
    assert bool(jnp.isfinite(loss2))
    assert jnp.allclose(loss2, loss_ref_val, atol=2e-3), "loss mismatch vs reference"

    print("KERNEL_OK")
</pallas_src>

<mosaic_0001>
module attributes {stable_mosaic.version = 11 : i64} {
  func.func @_bigram_kernel(%arg0: memref<16x1xi32, #tpu.memory_space<vmem>>, %arg1: memref<256x32xbf16, #tpu.memory_space<vmem>>, %arg2: memref<32x128xbf16, #tpu.memory_space<vmem>>, %arg3: memref<1x128xf32, #tpu.memory_space<vmem>>, %arg4: memref<16x128xf32, #tpu.memory_space<vmem>>) attributes {dimension_semantics = [], scalar_prefetch = 0 : i64, scratch_operands = 0 : i64, tpu.core_type = #tpu.core_type<tc>} {
    %0 = tpu.iota {dimensions = array<i32: 1>} : vector<16x256xi32>
    %1 = tpu.iota {dimensions = array<i32: 0>} : vector<16x256xi32>
    %c0 = arith.constant 0 : index
    %c0_0 = arith.constant 0 : index
    %2 = vector.load %arg0[%c0, %c0_0] : memref<16x1xi32, #tpu.memory_space<vmem>>, vector<16x1xi32>
    %3 = vector.broadcast %2 : vector<16x1xi32> to vector<16x256xi32>
    %4 = arith.cmpi eq, %0, %3 : vector<16x256xi32>
    %c8_i32 = arith.constant 8 : i32
    %c0_i32 = arith.constant 0 : i32
    %5 = arith.cmpi eq, %c8_i32, %c0_i32 : i32
    %c1_i32 = arith.constant 1 : i32
    %6 = arith.select %5, %c1_i32, %c8_i32 : i32
    %7 = vector.broadcast %6 : i32 to vector<16x256xi32>
    %8 = arith.remsi %1, %7 : vector<16x256xi32>
    %c0_i32_1 = arith.constant 0 : i32
    %9 = vector.broadcast %c0_i32_1 : i32 to vector<16x256xi32>
    %10 = arith.cmpi ne, %8, %9 : vector<16x256xi32>
    %c0_i32_2 = arith.constant 0 : i32
    %11 = vector.broadcast %c0_i32_2 : i32 to vector<16x256xi32>
    %12 = arith.cmpi slt, %8, %11 : vector<16x256xi32>
    %c0_i32_3 = arith.constant 0 : i32
    %13 = arith.cmpi slt, %6, %c0_i32_3 : i32
    %14 = vector.broadcast %13 : i1 to vector<16x256xi1>
    %15 = vector.broadcast %14 : vector<16x256xi1> to vector<16x256xi1>
    %16 = arith.xori %12, %15 : vector<16x256xi1>
    %17 = arith.andi %16, %10 : vector<16x256xi1>
    %18 = vector.broadcast %6 : i32 to vector<16x256xi32>
    %19 = arith.addi %8, %18 : vector<16x256xi32>
    %20 = arith.select %17, %19, %8 : vector<16x256xi1>, vector<16x256xi32>
    %c128_i32 = arith.constant 128 : i32
    %21 = vector.broadcast %c128_i32 : i32 to vector<16x256xi32>
    %22 = arith.addi %21, %20 : vector<16x256xi32>
    %23 = arith.cmpi eq, %0, %22 : vector<16x256xi32>
    %24 = arith.ori %4, %23 : vector<16x256xi1>
    %25 = arith.extui %24 : vector<16x256xi1> to vector<16x256xi32>
    %26 = arith.sitofp %25 : vector<16x256xi32> to vector<16x256xf32>
    %27 = arith.truncf %26 : vector<16x256xf32> to vector<16x256xbf16>
    %c0_4 = arith.constant 0 : index
    %c0_5 = arith.constant 0 : index
    %28 = vector.load %arg1[%c0_4, %c0_5] : memref<256x32xbf16, #tpu.memory_space<vmem>>, vector<256x32xbf16>
    %cst = arith.constant dense<0.000000e+00> : vector<16x32xf32>
    %29 = tpu.matmul %27, %28, %cst {dimension_numbers = #tpu.dot_dimension_numbers<[1], [0], [0], [1], [0, 0, 1, 1], [], []>} : vector<16x256xbf16>, vector<256x32xbf16>, vector<16x32xf32> -> vector<16x32xf32>
    %30 = arith.truncf %29 : vector<16x32xf32> to vector<16x32xbf16>
    %c0_6 = arith.constant 0 : index
    %c0_7 = arith.constant 0 : index
    %31 = vector.load %arg2[%c0_6, %c0_7] : memref<32x128xbf16, #tpu.memory_space<vmem>>, vector<32x128xbf16>
    %cst_8 = arith.constant dense<0.000000e+00> : vector<16x128xf32>
    %32 = tpu.matmul %30, %31, %cst_8 {dimension_numbers = #tpu.dot_dimension_numbers<[1], [0], [0], [1], [0, 0, 1, 1], [], []>} : vector<16x32xbf16>, vector<32x128xbf16>, vector<16x128xf32> -> vector<16x128xf32>
    %c0_9 = arith.constant 0 : index
    %c0_10 = arith.constant 0 : index
    %33 = vector.load %arg3[%c0_9, %c0_10] : memref<1x128xf32, #tpu.memory_space<vmem>>, vector<1x128xf32>
    %34 = vector.broadcast %33 : vector<1x128xf32> to vector<16x128xf32>
    %35 = arith.addf %32, %34 : vector<16x128xf32>
    %c0_11 = arith.constant 0 : index
    %c0_12 = arith.constant 0 : index
    %36 = vector.load %arg4[%c0_11, %c0_12] : memref<16x128xf32, #tpu.memory_space<vmem>>, vector<16x128xf32>
    tpu.vector_store %arg4[%c0_11, %c0_12], %35 {strides = array<i32>} : memref<16x128xf32, #tpu.memory_space<vmem>>, vector<16x128xf32>,
    return
  }
}

</mosaic_0001>

<llo_original>
// kernel: tpu_custom_call.1
$region0: #{tpu_custom_call.1}
  #allocation0 [shape = 'u32[]', space=smem, size = 0x4, offset = 0x4, fixed_abs, tag = 'smem constant byte address 0x4 - core index']
  #allocation1 [shape = 'u32[144,128]{1,0:T(1,128)}', space=vmem, size = 0x12000, scoped, tag = 'internal scratch']
  %s0 = inlined_call_operand.vmem [shape: s32[16,1], index: 0, kind: input, shape index: {}]
  %s1 = inlined_call_operand.vmem [shape: bf16[256,32], index: 1, kind: input, shape index: {}]
  %s2 = inlined_call_operand.vmem [shape: bf16[32,128], index: 2, kind: input, shape index: {}]
  %s3 = inlined_call_operand.vmem [shape: f32[1,128], index: 3, kind: input, shape index: {}]
  %s4 = inlined_call_operand.hbm [shape: f32[16,128], index: 4, kind: output, shape index: {}]
  %s5 = sld [smem:[#allocation0]]
  $region26: #{tpu_custom_call.1} parent=0
    _
  %s7 = ssub.s32 1, %s5
  %s8 = scalar_select 0, %s7, %s5
  $region1: #{tpu_custom_call.1} parent=0
    #allocation2 [shape = 'u8[8192]{0}', space=vmem, size = 0x2000, scoped, tag = 'output window, operand 0, single buffered']
    #allocation3 [shape = 's32[1]{0}', space=sflag, size = 0x4, scoped, tag = 'scoped memory for tpu_custom_call.1']
    %9 = vsyncpa [#allocation3], 0
    // Predicated region
    $region2: #{tpu_custom_call.1} parent=1 // pred_check
      _
    $region3: #{tpu_custom_call.1} parent=1 // pred_check_branch
      %11 = sbr.rel (0) target = $region5
    $region4: #{tpu_custom_call.1} parent=1 // pred_region
      _
    $region5: #{tpu_custom_call.1} parent=1 // pred_fallthru
      _
    // Predicated region
    $region6: #{tpu_custom_call.1} parent=1 // pred_check
      _
    $region7: #{tpu_custom_call.1} parent=1 // pred_check_branch
      %13 = sbr.rel (0) target = $region9
    $region8: #{tpu_custom_call.1} parent=1 // pred_region
      _
    $region9: #{tpu_custom_call.1} parent=1 // pred_fallthru
      _
    // Predicated region
    $region10: #{tpu_custom_call.1} parent=1 // pred_check
      _
    $region11: #{tpu_custom_call.1} parent=1 // pred_check_branch
      %15 = sbr.rel (0) target = $region13
    $region12: #{tpu_custom_call.1} parent=1 // pred_region
      _
    $region13: #{tpu_custom_call.1} parent=1 // pred_fallthru
      _
    // Predicated region
    $region14: #{tpu_custom_call.1} parent=1 // pred_check
      _
    $region15: #{tpu_custom_call.1} parent=1 // pred_check_branch
      %17 = sbr.rel (0) target = $region17
    $region16: #{tpu_custom_call.1} parent=1 // pred_region
      _
    $region17: #{tpu_custom_call.1} parent=1 // pred_fallthru
      _
    %v19 = vlaneseq
    %v20 = vand.u32 %v19, 127
    %v21 = vadd.s32 %v20, 128
    %v22 = vlaneseq
    %v23 = vshrl.u32 %v22, 7
    %v24 = vadd.s32 %v23, 8
    %v25 = vld [vmem:[%s0] sm:$0xff]
    %v26 = vld [vmem:[%s0 + $0x8] sm:$0xff]
    %27 = vset.pattern.permute.xlu0 0
    %28 = vperm.xlu0 %27, %v25
    %v29 = vpop.permute.xlu0 %28
    %30 = vset.pattern.permute.xlu0 0
    %31 = vperm.xlu0 %30, %v26
    %v32 = vpop.permute.xlu0 %31
    %vm33 = vcmp.eq.s32.totalorder %v20, %v29
    %vm34 = vcmp.eq.s32.totalorder %v21, %v29
    %vm35 = vcmp.eq.s32.totalorder %v20, %v32
    %vm36 = vcmp.eq.s32.totalorder %v21, %v32
    %vm37 = vcmp.lt.s32.totalorder %v23, 0
    %v38 = vsub.s32 0, %v23
    %v39 = vsel %vm37, %v38, %v23
    %v40 = vshrl.u32 %v39, 3
    %v41 = vand.u32 %v39, 7
    %v42 = vsub.s32 0, %v41
    %v43 = vsel %vm37, %v42, %v41
    %vm44 = vcmp.lt.s32.totalorder %v24, 0
    %v45 = vsub.s32 0, %v24
    %v46 = vsel %vm44, %v45, %v24
    %v47 = vshrl.u32 %v46, 3
    %v48 = vand.u32 %v46, 7
    %v49 = vsub.s32 0, %v48
    %v50 = vsel %vm44, %v49, %v48
    %vm51 = vcmp.ne.s32.totalorder %v43, 0
    %vm52 = vcmp.ne.s32.totalorder %v50, 0
    %vm53 = vcmp.lt.s32.totalorder %v43, 0
    %vm54 = vcmp.lt.s32.totalorder %v50, 0
    %vm55 = vmand %vm53, %vm51
    %vm56 = vmand %vm54, %vm52
    %v57 = vadd.s32 %v43, 8
    %v58 = vadd.s32 %v50, 8
    %v59 = vsel %vm55, %v57, %v43
    %v60 = vsel %vm56, %v58, %v50
    %v61 = vadd.s32 %v59, 128
    %v62 = vadd.s32 %v60, 128
    %vm63 = vcmp.eq.s32.totalorder %v20, %v61
    %vm64 = vcmp.eq.s32.totalorder %v21, %v61
    %vm65 = vcmp.eq.s32.totalorder %v20, %v62
    %vm66 = vcmp.eq.s32.totalorder %v21, %v62
    %vm67 = vmor %vm33, %vm63
    %vm68 = vmor %vm34, %vm64
    %vm69 = vmor %vm35, %vm65
    %vm70 = vmor %vm36, %vm66
    %v71 = vsel %vm67, 1, 0
    %v72 = vsel %vm68, 1, 0
    %v73 = vsel %vm69, 1, 0
    %v74 = vsel %vm70, 1, 0
    %v75 = vcvt.s32.f32 %v71
    %v76 = vcvt.s32.f32 %v72
    %v77 = vcvt.s32.f32 %v73
    %v78 = vcvt.s32.f32 %v74
    %v79 = vpack.c.bf16 %v77, %v75
    %v80 = vpack.c.bf16 %v78, %v76
    %v81 = vld [vmem:[%s1] sm:$0xf]
    %v82 = vld [vmem:[%s1 + $0x4] sm:$0xf]
    %v83 = vld [vmem:[%s1 + $0x8] sm:$0xf]
    %v84 = vld [vmem:[%s1 + $0xc] sm:$0xf]
    %v85 = vld [vmem:[%s1 + $0x10] sm:$0xf]
    %v86 = vld [vmem:[%s1 + $0x14] sm:$0xf]
    %v87 = vld [vmem:[%s1 + $0x18] sm:$0xf]
    %v88 = vld [vmem:[%s1 + $0x1c] sm:$0xf]
    %v89 = vld [vmem:[%s1 + $0x20] sm:$0xf]
    %v90 = vld [vmem:[%s1 + $0x24] sm:$0xf]
    %v91 = vld [vmem:[%s1 + $0x28] sm:$0xf]
    %v92 = vld [vmem:[%s1 + $0x2c] sm:$0xf]
    %v93 = vld [vmem:[%s1 + $0x30] sm:$0xf]
    %v94 = vld [vmem:[%s1 + $0x34] sm:$0xf]
    %v95 = vld [vmem:[%s1 + $0x38] sm:$0xf]
    %v96 = vld [vmem:[%s1 + $0x3c] sm:$0xf]
    %v97 = vld [vmem:[%s1 + $0x40] sm:$0xf]
    %v98 = vld [vmem:[%s1 + $0x44] sm:$0xf]
    %v99 = vld [vmem:[%s1 + $0x48] sm:$0xf]
    %v100 = vld [vmem:[%s1 + $0x4c] sm:$0xf]
    %v101 = vld [vmem:[%s1 + $0x50] sm:$0xf]
    %v102 = vld [vmem:[%s1 + $0x54] sm:$0xf]
    %v103 = vld [vmem:[%s1 + $0x58] sm:$0xf]
    %v104 = vld [vmem:[%s1 + $0x5c] sm:$0xf]
    %v105 = vld [vmem:[%s1 + $0x60] sm:$0xf]
    %v106 = vld [vmem:[%s1 + $0x64] sm:$0xf]
    %v107 = vld [vmem:[%s1 + $0x68] sm:$0xf]
    %v108 = vld [vmem:[%s1 + $0x6c] sm:$0xf]
    %v109 = vld [vmem:[%s1 + $0x70] sm:$0xf]
    %v110 = vld [vmem:[%s1 + $0x74] sm:$0xf]
    %v111 = vld [vmem:[%s1 + $0x78] sm:$0xf]
    %v112 = vld [vmem:[%s1 + $0x7c] sm:$0xf]
    %v145 = vunpack.c.l.b16 %v81
    %v146 = vunpack.c.l.b16 %v82
    %v147 = vunpack.c.l.b16 %v83
    %v148 = vunpack.c.l.b16 %v84
    %v149 = vunpack.c.l.b16 %v85
    %v150 = vunpack.c.l.b16 %v86
    %v151 = vunpack.c.l.b16 %v87
    %v152 = vunpack.c.l.b16 %v88
    %v153 = vunpack.c.l.b16 %v89
    %v154 = vunpack.c.l.b16 %v90
    %v155 = vunpack.c.l.b16 %v91
    %v156 = vunpack.c.l.b16 %v92
    %v157 = vunpack.c.l.b16 %v93
    %v158 = vunpack.c.l.b16 %v94
    %v159 = vunpack.c.l.b16 %v95
    %v160 = vunpack.c.l.b16 %v96
    %v161 = vunpack.c.l.b16 %v97
    %v162 = vunpack.c.l.b16 %v98
    %v163 = vunpack.c.l.b16 %v99
    %v164 = vunpack.c.l.b16 %v100
    %v165 = vunpack.c.l.b16 %v101
    %v166 = vunpack.c.l.b16 %v102
    %v167 = vunpack.c.l.b16 %v103
    %v168 = vunpack.c.l.b16 %v104
    %v169 = vunpack.c.l.b16 %v105
    %v170 = vunpack.c.l.b16 %v106
    %v171 = vunpack.c.l.b16 %v107
    %v172 = vunpack.c.l.b16 %v108
    %v173 = vunpack.c.l.b16 %v109
    %v174 = vunpack.c.l.b16 %v110
    %v175 = vunpack.c.l.b16 %v111
    %v176 = vunpack.c.l.b16 %v112
    %v177 = vpack.c.b16 %v146, %v145
    %v178 = vpack.c.b16 %v148, %v147
    %v179 = vpack.c.b16 %v150, %v149
    %v180 = vpack.c.b16 %v152, %v151
    %v181 = vpack.c.b16 %v154, %v153
    %v182 = vpack.c.b16 %v156, %v155
    %v183 = vpack.c.b16 %v158, %v157
    %v184 = vpack.c.b16 %v160, %v159
    %v185 = vpack.c.b16 %v162, %v161
    %v186 = vpack.c.b16 %v164, %v163
    %v187 = vpack.c.b16 %v166, %v165
    %v188 = vpack.c.b16 %v168, %v167
    %v189 = vpack.c.b16 %v170, %v169
    %v190 = vpack.c.b16 %v172, %v171
    %v191 = vpack.c.b16 %v174, %v173
    %v192 = vpack.c.b16 %v176, %v175
    %209 = vmatprep.subr.bf16.mxu0 0
    %210 = vmatpush1.bf16.msra.mxu0 %v177
    %211 = vmatprep.subr.bf16.mxu0 0
    %212 = vmatpush1.bf16.msra.mxu0 %v178
    %213 = vmatprep.subr.bf16.mxu0 0
    %214 = vmatpush1.bf16.msra.mxu0 %v179
    %215 = vmatprep.subr.bf16.mxu0 0
    %216 = vmatpush1.bf16.msra.mxu0 %v180
    %217 = vmatprep.subr.bf16.mxu0 0
    %218 = vmatpush1.bf16.msra.mxu0 %v181
    %219 = vmatprep.subr.bf16.mxu0 0
    %220 = vmatpush1.bf16.msra.mxu0 %v182
    %221 = vmatprep.subr.bf16.mxu0 0
    %222 = vmatpush1.bf16.msra.mxu0 %v183
    %223 = vmatprep.subr.bf16.mxu0 0
    %224 = vmatpush1.bf16.msra.mxu0 %v184
    %225 = vmatprep.subr.bf16.mxu0 0
    %226 = vmatpush1.bf16.msra.mxu0 %v185
    %227 = vmatprep.subr.bf16.mxu0 0
    %228 = vmatpush1.bf16.msra.mxu0 %v186
    %229 = vmatprep.subr.bf16.mxu0 0
    %230 = vmatpush1.bf16.msra.mxu0 %v187
    %231 = vmatprep.subr.bf16.mxu0 0
    %232 = vmatpush1.bf16.msra.mxu0 %v188
    %233 = vmatprep.subr.bf16.mxu0 0
    %234 = vmatpush1.bf16.msra.mxu0 %v189
    %235 = vmatprep.subr.bf16.mxu0 0
    %236 = vmatpush1.bf16.msra.mxu0 %v190
    %237 = vmatprep.subr.bf16.mxu0 0
    %238 = vmatpush1.bf16.msra.mxu0 %v191
    %239 = vmatprep.subr.bf16.mxu0 0
    %240 = vmatpush1.bf16.msra.mxu0 %v192
    %241 = vmatprep.mubr.bf16.mxu0 %v80
    %242 = vmatmul.mubr.bf16.gmra.mrb[0].mxu0 %v79
    %v243 = vpop.f32.mrb[0].mxu0
    %v244 = vadd.f32 0.0, %v243
    %v245 = vpop.f32.mrb[0].mxu0
    %v246 = vpop.f32.mrb[0].mxu0
    %v247 = vadd.f32 0.0, %v246
    %v248 = vpop.f32.mrb[0].mxu0
    %249 = vdwg.mxu0
    %v250 = vpack.c.bf16 %v247, %v244
    %v251 = vld [vmem:[%s2] sm:$0xf]
    %v252 = vld [vmem:[%s2 + $0x4] sm:$0xf]
    %v253 = vld [vmem:[%s2 + $0x8] sm:$0xf]
    %v254 = vld [vmem:[%s2 + $0xc] sm:$0xf]
    %v255 = vld [vmem:[%s3] sm:$0x1]
    %v257 = vlaneseq
    %v258 = vshrl.u32 %v257, 7
    %v259 = vsub.s32 0, %v258
    %v260 = vrot.slane %v255, %v259
    %v266 = vunpack.c.l.b16 %v251
    %v267 = vunpack.c.l.b16 %v252
    %v268 = vunpack.c.l.b16 %v253
    %v269 = vunpack.c.l.b16 %v254
    %v270 = vpack.c.b16 %v267, %v266
    %v271 = vpack.c.b16 %v269, %v268
    %vm274 = vcmask 261120
    %v276 = vsel %vm274, %v250, 0
    %278 = vmatprep.subr.bf16.mxu0 0
    %279 = vmatpush1.bf16.msra.mxu0 %v270
    %280 = vmatprep.subr.bf16.mxu0 0
    %281 = vmatpush1.bf16.msra.mxu0 %v271
    %282 = vmatprep.subr.bf16.mxu0 0
    %283 = vmatpush1.bf16.msra.mxu0 0
    %284 = vmatprep.subr.bf16.mxu0 0
    %285 = vmatpush1.bf16.msra.mxu0 0
    %286 = vmatprep.subr.bf16.mxu0 0
    %287 = vmatpush1.bf16.msra.mxu0 0
    %288 = vmatprep.subr.bf16.mxu0 0
    %289 = vmatpush1.bf16.msra.mxu0 0
    %290 = vmatprep.subr.bf16.mxu0 0
    %291 = vmatpush1.bf16.msra.mxu0 0
    %292 = vmatprep.subr.bf16.mxu0 0
    %293 = vmatpush1.bf16.msra.mxu0 0
    %294 = vmatprep.subr.bf16.mxu0 0
    %295 = vmatpush1.bf16.msra.mxu0 0
    %296 = vmatprep.subr.bf16.mxu0 0
    %297 = vmatpush1.bf16.msra.mxu0 0
    %298 = vmatprep.subr.bf16.mxu0 0
    %299 = vmatpush1.bf16.msra.mxu0 0
    %300 = vmatprep.subr.bf16.mxu0 0
    %301 = vmatpush1.bf16.msra.mxu0 0
    %302 = vmatprep.subr.bf16.mxu0 0
    %303 = vmatpush1.bf16.msra.mxu0 0
    %304 = vmatprep.subr.bf16.mxu0 0
    %305 = vmatpush1.bf16.msra.mxu0 0
    %306 = vmatprep.subr.bf16.mxu0 0
    %307 = vmatpush1.bf16.msra.mxu0 0
    %308 = vmatprep.subr.bf16.mxu0 0
    %309 = vmatpush1.bf16.msra.mxu0 0
    %310 = vmatprep.mubr.bf16.mxu0 0
    %311 = vmatmul.mubr.bf16.gmra.mrb[0].mxu0 %v276
    %v312 = vpop.f32.mrb[0].mxu0
    %v313 = vadd.f32 %v260, %v312
    %v314 = vpop.f32.mrb[0].mxu0
    %v315 = vpop.f32.mrb[0].mxu0
    %v316 = vadd.f32 %v260, %v315
    %v317 = vpop.f32.mrb[0].mxu0
    %318 = vdwg.mxu0
    %319 = vst [vmem:[#allocation2] sm:$0xff] %v313
    %320 = vst [vmem:[#allocation2 + $0x8] sm:$0xff] %v316
    // Predicated region
    $region18: #{tpu_custom_call.1} parent=1 // pred_check
      _
    $region19: #{tpu_custom_call.1} parent=1 // pred_check_branch
      %322 = sbr.rel (0) target = $region21
    $region20: #{tpu_custom_call.1} parent=1 // pred_region
      %s324 = ssub.s32 256, 256
      %325 = vsyncadd [#allocation3], %s324
      %s326 = sshll.u32 [#allocation2], 4
      %s327 = int_to_ptr.vmem [resolvable:$true] %s326
      %332 = dma.vmem_to_hbm [thread:$0]  %s327, 256, %s4, [#allocation3], 128, 128, 8
    $region21: #{tpu_custom_call.1} parent=1 // pred_fallthru
      _
    // Predicated region
    $region22: #{tpu_custom_call.1} parent=1 // pred_check
      _
    $region23: #{tpu_custom_call.1} parent=1 // pred_check_branch
      %334 = sbr.rel (0) target = $region25
    $region24: #{tpu_custom_call.1} parent=1 // pred_region
      %335 = dma.done [#allocation3], 256
    $region25: #{tpu_custom_call.1} parent=1 // pred_fallthru
      _
    %336 = vsyncpa [#allocation3], 1

</llo_original>
